<compile_context>
chip_gen: v6e
topology: v6e:2x2x1
jax: 0.10.0
libtpu: 0.0.40
codegen_flags: <defaults>
</compile_context>

<pallas_src>
import functools

import jax
import jax.numpy as jnp
from jax import lax
from jax.experimental import pallas as pl
from jax.experimental.pallas import tpu as pltpu

# ---- static module config (from TR.__init__ as used in VCNet) ---------------
DEGREE = 2
KNOTS = (0.33, 0.66)                       # interior knots, endpoints excluded
NUM_BASIS = DEGREE + 1 + len(KNOTS)        # = self.spb.num_of_basis = d

LANES = 128                                # TPU vreg lane width


def _tr_kernel(w_ref, t_ref, o_ref, *, degree, knots):
    """Fused truncated-power basis + dot-with-weight on a lane-dense tile.

    w_ref : SMEM (d,)               f32  -- TR.weight (resident for the call)
    t_ref : VMEM (block_rows, 128)  f32  -- treatment values (lane-dense slab)
    o_ref : VMEM (block_rows, 128)  f32  -- basis(t) @ weight
    """
    x = t_ref[...]                                   # (block_rows, 128)
    nb = degree + 1 + len(knots)
    w = [w_ref[j] for j in range(nb)]                # read SMEM scalars once

    # Polynomial part (j = 0..degree) via Horner's rule:
    #   ((w_d * x + w_{d-1}) * x + ... ) * x + w_0
    acc = w[degree]
    for j in range(degree - 1, -1, -1):
        acc = acc * x + w[j]

    # Spline part: relu(x - knot) ** degree via explicit multiplies
    # (matches the PyTorch degree >= 2 branch).
    for i, knot in enumerate(knots):
        r = jnp.maximum(x - knot, 0.0)
        rp = r
        for _ in range(degree - 1):
            rp = rp * r
        acc = acc + w[degree + 1 + i] * rp

    o_ref[...] = acc


def _tr_jax(t_flat, weight, *, degree=DEGREE, knots=KNOTS):
    """Pure-JAX reference of Truncated_power.forward + matmul (also the
    small-batch fast path, where kernel-launch overhead dominates)."""
    x = t_flat.astype(jnp.float32)
    cols = [jnp.ones_like(x)]
    for j in range(1, degree + 1):
        cols.append(x ** j)
    for k in knots:
        cols.append(jnp.maximum(x - k, 0.0) ** degree)
    basis = jnp.stack(cols, axis=-1)                 # (B, d)
    return basis @ weight.astype(jnp.float32)


def tr_forward(t, weight, *, degree=DEGREE, knots=KNOTS,
               block_rows=4096, use_pallas=None):
    """TR.forward. t: (B, 1) or (B,) f32; weight: (d,) f32. Returns (B,) f32."""
    if not isinstance(degree, int) or degree == 0:
        raise ValueError("Degree should be a nonzero int")
    if degree < 2:
        # TODO(synk): the original degree==1 spline branch (relu(x - knot),
        # different knot indexing) is not implemented; VCNet uses degree=2.
        raise ValueError("Only degree >= 2 is supported by this kernel")

    t_flat = jnp.asarray(t, jnp.float32).reshape(-1)   # mirrors t.squeeze()
    w = jnp.asarray(weight, jnp.float32)
    B = t_flat.shape[0]

    if use_pallas is None:
        # Below ~256K elements a standalone kernel launch + layout plumbing
        # costs more than letting XLA fuse the ~10-op elementwise expression.
        use_pallas = B >= (1 << 18)
    if not use_pallas:
        return _tr_jax(t_flat, w, degree=degree, knots=knots)

    # Lane-dense slab. Free reshape when B is a multiple of 128; otherwise pad
    # only to the next multiple of 128 (<= 127 extra elements).
    if B % LANES == 0:
        rows_total = B // LANES
        t2d = t_flat.reshape(rows_total, LANES)
    else:
        rows_total = -(-B // LANES)
        t2d = jnp.pad(t_flat, (0, rows_total * LANES - B)).reshape(
            rows_total, LANES)

    # Block rows: large enough to amortize per-step pipeline overhead
    # (4096 rows -> 2 MiB/buffer; 4 buffers = 8 MiB, inside v5e's 16 MiB
    # scoped VMEM default), capped so v7x gets >= 2 grid steps to shard
    # across its two TensorCores, and sublane-aligned (multiple of 8).
    br = min(block_rows, rows_total)
    if rows_total >= 16:
        br = min(br, rows_total // 2)
    if br >= 8:
        br = (br // 8) * 8
    grid = pl.cdiv(rows_total, br)      # Pallas masks the uneven tail block

    kernel = functools.partial(_tr_kernel, degree=degree, knots=tuple(knots))
    out2d = pl.pallas_call(
        kernel,
        out_shape=jax.ShapeDtypeStruct((rows_total, LANES), jnp.float32),
        grid=(grid,),
        in_specs=[
            # (d,) weights: whole array resident in SMEM for the kernel's
            # lifetime (constant mapping -> no per-grid-step re-staging).
            pl.BlockSpec(memory_space=pltpu.MemorySpace.SMEM),
            pl.BlockSpec((br, LANES), lambda i: (i, 0)),       # t tile -> VMEM
        ],
        out_specs=pl.BlockSpec((br, LANES), lambda i: (i, 0)),
        compiler_params=pltpu.CompilerParams(
            dimension_semantics=("parallel",),                 # megacore/v7x
        ),
    )(w, t2d)

    out_flat = out2d.reshape(-1)
    if out_flat.shape[0] == B:
        return out_flat                 # no trailing slice when no padding
    # Padded tail lanes produce w[0] (constant basis term); drop them.
    return lax.slice(out_flat, (0,), (B,))


if __name__ == "__main__":
    key = jax.random.PRNGKey(0)
    k_t, k_t2, k_t3, k_w = jax.random.split(key, 4)

    weight = jax.random.uniform(k_w, (NUM_BASIS,), dtype=jnp.float32)

    # --- small case, matching the PyTorch usage shape (B, 1) -----------------
    B = 8
    t = jax.random.uniform(k_t, (B, 1), dtype=jnp.float32)
    out = jax.block_until_ready(tr_forward(t, weight, use_pallas=True))
    ref = _tr_jax(t.reshape(-1), weight)
    assert out.shape == (B,)
    assert jnp.allclose(out, ref, atol=1e-5, rtol=1e-5), (out, ref)

    # --- exact multiple of 128: zero-copy reshape, even 2-step grid ----------
    B2 = 4096                                   # 32 rows -> 2 tiles of 16
    t2 = jax.random.uniform(k_t2, (B2, 1), dtype=jnp.float32)
    out2 = jax.block_until_ready(tr_forward(t2, weight, use_pallas=True))
    ref2 = _tr_jax(t2.reshape(-1), weight)
    assert out2.shape == (B2,)
    assert jnp.allclose(out2, ref2, atol=1e-5, rtol=1e-5)

    # --- ragged case: tail padding + uneven last grid block ------------------
    B3 = 2100                                   # 17 rows -> 3 tiles of 8 (last masked)
    t3 = jax.random.uniform(k_t3, (B3, 1), dtype=jnp.float32)
    out3 = jax.block_until_ready(
        tr_forward(t3, weight, use_pallas=True, block_rows=8))
    ref3 = _tr_jax(t3.reshape(-1), weight)
    assert out3.shape == (B3,)
    assert jnp.allclose(out3, ref3, atol=1e-5, rtol=1e-5)

    print("KERNEL_OK")
</pallas_src>

<mosaic_0001>
module attributes {stable_mosaic.version = 11 : i64} {
  func.func @_tr_kernel(%arg0: i32, %arg1: memref<5xf32, #tpu.memory_space<smem>>, %arg2: memref<1x128xf32, #tpu.memory_space<vmem>>, %arg3: memref<1x128xf32, #tpu.memory_space<vmem>>) attributes {dimension_semantics = [#tpu.dimension_semantics<parallel>], iteration_bounds = array<i64: 1>, scalar_prefetch = 0 : i64, scratch_operands = 0 : i64, tpu.core_type = #tpu.core_type<tc>, window_params = [{transform_indices = @transform_0, window_bounds = array<i64: 5>}, {transform_indices = @transform_1, window_bounds = array<i64: 1, 128>}, {transform_indices = @transform_2, window_bounds = array<i64: 1, 128>}]} {
    %c0 = arith.constant 0 : index
    %c0_0 = arith.constant 0 : index
    %0 = vector.load %arg2[%c0, %c0_0] : memref<1x128xf32, #tpu.memory_space<vmem>>, vector<1x128xf32>
    %c0_1 = arith.constant 0 : index
    %1 = memref.load %arg1[%c0_1] : memref<5xf32, #tpu.memory_space<smem>>
    %c1 = arith.constant 1 : index
    %2 = memref.load %arg1[%c1] : memref<5xf32, #tpu.memory_space<smem>>
    %c2 = arith.constant 2 : index
    %3 = memref.load %arg1[%c2] : memref<5xf32, #tpu.memory_space<smem>>
    %c3 = arith.constant 3 : index
    %4 = memref.load %arg1[%c3] : memref<5xf32, #tpu.memory_space<smem>>
    %c4 = arith.constant 4 : index
    %5 = memref.load %arg1[%c4] : memref<5xf32, #tpu.memory_space<smem>>
    %6 = vector.broadcast %3 : f32 to vector<1x128xf32>
    %7 = arith.mulf %6, %0 : vector<1x128xf32>
    %8 = vector.broadcast %2 : f32 to vector<1x128xf32>
    %9 = arith.addf %7, %8 : vector<1x128xf32>
    %10 = arith.mulf %9, %0 : vector<1x128xf32>
    %11 = vector.broadcast %1 : f32 to vector<1x128xf32>
    %12 = arith.addf %10, %11 : vector<1x128xf32>
    %cst = arith.constant 3.300000e-01 : f32
    %13 = vector.broadcast %cst : f32 to vector<1x128xf32>
    %14 = arith.subf %0, %13 : vector<1x128xf32>
    %cst_2 = arith.constant 0.000000e+00 : f32
    %15 = vector.broadcast %cst_2 : f32 to vector<1x128xf32>
    %16 = arith.maximumf %14, %15 : vector<1x128xf32>
    %17 = arith.mulf %16, %16 : vector<1x128xf32>
    %18 = vector.broadcast %4 : f32 to vector<1x128xf32>
    %19 = arith.mulf %18, %17 : vector<1x128xf32>
    %20 = arith.addf %12, %19 : vector<1x128xf32>
    %cst_3 = arith.constant 6.600000e-01 : f32
    %21 = vector.broadcast %cst_3 : f32 to vector<1x128xf32>
    %22 = arith.subf %0, %21 : vector<1x128xf32>
    %cst_4 = arith.constant 0.000000e+00 : f32
    %23 = vector.broadcast %cst_4 : f32 to vector<1x128xf32>
    %24 = arith.maximumf %22, %23 : vector<1x128xf32>
    %25 = arith.mulf %24, %24 : vector<1x128xf32>
    %26 = vector.broadcast %5 : f32 to vector<1x128xf32>
    %27 = arith.mulf %26, %25 : vector<1x128xf32>
    %28 = arith.addf %20, %27 : vector<1x128xf32>
    %c0_5 = arith.constant 0 : index
    %c0_6 = arith.constant 0 : index
    %29 = vector.load %arg3[%c0_5, %c0_6] : memref<1x128xf32, #tpu.memory_space<vmem>>, vector<1x128xf32>
    tpu.vector_store %arg3[%c0_5, %c0_6], %28 {strides = array<i32>} : memref<1x128xf32, #tpu.memory_space<vmem>>, vector<1x128xf32>,
    return
  }
  func.func @transform_0(%arg0: i32) -> i32 {
    %c0_i32 = arith.constant 0 : i32
    %c0_i32_0 = arith.constant 0 : i32
    return %c0_i32 : i32
  }
  func.func @transform_1(%arg0: i32) -> (i32, i32) {
    %c0_i32 = arith.constant 0 : i32
    %c0_i32_0 = arith.constant 0 : i32
    return %arg0, %c0_i32 : i32, i32
  }
  func.func @transform_2(%arg0: i32) -> (i32, i32) {
    %c0_i32 = arith.constant 0 : i32
    %c0_i32_0 = arith.constant 0 : i32
    return %arg0, %c0_i32 : i32, i32
  }
}

</mosaic_0001>

<llo_original>
// kernel: tpu_custom_call.1
$region0: #{tpu_custom_call.1}
  #allocation0 [shape = 'u32[]', space=smem, size = 0x4, offset = 0x4, fixed_abs, tag = 'smem constant byte address 0x4 - core index']
  #allocation1 [shape = 'u32[144,128]{1,0:T(1,128)}', space=vmem, size = 0x12000, scoped, tag = 'internal scratch']
  %s0 = inlined_call_operand.hbm [shape: f32[5], index: 0, kind: input, shape index: {}]
  %s1 = inlined_call_operand.vmem [shape: f32[1,128], index: 1, kind: input, shape index: {}]
  %s2 = inlined_call_operand.hbm [shape: f32[1,128], index: 2, kind: output, shape index: {}]
  %s3 = sld [smem:[#allocation0]]
  $region22: #{tpu_custom_call.1} parent=0
    _
  %s5 = ssub.s32 1, %s3
  %s6 = scalar_select 0, %s5, %s3
  $region1: #{tpu_custom_call.1} parent=0
    #allocation2 [shape = 'u8[512]{0}', space=smem, size = 0x200, scoped, tag = 'input window, operand 0, single buffered']
    #allocation3 [shape = 's32[1]{0}', space=sflag, size = 0x4, scoped, tag = 'scoped memory for tpu_custom_call.1']
    #allocation4 [shape = 's32[1]{0}', space=sflag, size = 0x4, scoped, tag = 'scoped memory for tpu_custom_call.1']
    #allocation5 [shape = 'u8[512]{0}', space=vmem, size = 0x400, scoped, tag = 'output window, operand 0, single buffered']
    %7 = vsyncpa [#allocation4], 0
    %8 = vsyncpa [#allocation3], 0
    // Predicated region
    $region2: #{tpu_custom_call.1} parent=1 // pred_check
      _
    $region3: #{tpu_custom_call.1} parent=1 // pred_check_branch
      %10 = sbr.rel (0) target = $region5
    $region4: #{tpu_custom_call.1} parent=1 // pred_region
      %s12 = ssub.s32 16, 16
      %13 = vsyncadd [#allocation4], %s12
      %16 = dma.hbm_to_smem %s0, 16, [#allocation2], [#allocation4]
    $region5: #{tpu_custom_call.1} parent=1 // pred_fallthru
      _
    // Predicated region
    $region6: #{tpu_custom_call.1} parent=1 // pred_check
      _
    $region7: #{tpu_custom_call.1} parent=1 // pred_check_branch
      %18 = sbr.rel (0) target = $region9
    $region8: #{tpu_custom_call.1} parent=1 // pred_region
      _
    $region9: #{tpu_custom_call.1} parent=1 // pred_fallthru
      _
    // Predicated region
    $region10: #{tpu_custom_call.1} parent=1 // pred_check
      _
    $region11: #{tpu_custom_call.1} parent=1 // pred_check_branch
      %20 = sbr.rel (0) target = $region13
    $region12: #{tpu_custom_call.1} parent=1 // pred_region
      %21 = dma.done [#allocation4], 16
    $region13: #{tpu_custom_call.1} parent=1 // pred_fallthru
      _
    %22 = sfence
    %v23 = vld [vmem:[%s1] sm:$0x1]
    %s24 = sld [smem:[#allocation2]]
    %s25 = sld [smem:[#allocation2 + $0x1]]
    %s26 = sld [smem:[#allocation2 + $0x2]]
    %s27 = sld [smem:[#allocation2 + $0x3]]
    %s28 = sld [smem:[#allocation2 + $0x4]]
    %v29 = vstv %s26
    %v30 = vmul.f32 %v29, %v23
    %v31 = vstv %s25
    %v32 = vadd.f32 %v30, %v31
    %v33 = vmul.f32 %v32, %v23
    %v34 = vstv %s24
    %v35 = vadd.f32 %v33, %v34
    %v36 = vsub.f32 %v23, 0.33
    %v37 = vmax.f32 %v36, 0.0
    %v38 = vmul.f32 %v37, %v37
    %v39 = vstv %s27
    %v40 = vmul.f32 %v39, %v38
    %v41 = vadd.f32 %v35, %v40
    %v42 = vsub.f32 %v23, 0.66
    %v43 = vmax.f32 %v42, 0.0
    %v44 = vmul.f32 %v43, %v43
    %v45 = vstv %s28
    %v46 = vmul.f32 %v45, %v44
    %v47 = vadd.f32 %v41, %v46
    %48 = vst [vmem:[#allocation5] sm:$0x1] %v47
    // Predicated region
    $region14: #{tpu_custom_call.1} parent=1 // pred_check
      _
    $region15: #{tpu_custom_call.1} parent=1 // pred_check_branch
      %50 = sbr.rel (0) target = $region17
    $region16: #{tpu_custom_call.1} parent=1 // pred_region
      %s52 = ssub.s32 16, 16
      %53 = vsyncadd [#allocation3], %s52
      %s55 = sshll.u32 [#allocation5], 4
      %s56 = int_to_ptr.vmem [resolvable:$true] %s55
      %58 = dma.vmem_to_hbm [thread:$0]  %s56, 16, %s2, [#allocation3]
    $region17: #{tpu_custom_call.1} parent=1 // pred_fallthru
      _
    // Predicated region
    $region18: #{tpu_custom_call.1} parent=1 // pred_check
      _
    $region19: #{tpu_custom_call.1} parent=1 // pred_check_branch
      %60 = sbr.rel (0) target = $region21
    $region20: #{tpu_custom_call.1} parent=1 // pred_region
      %61 = dma.done [#allocation3], 16
    $region21: #{tpu_custom_call.1} parent=1 // pred_fallthru
      _
    %62 = vsyncpa [#allocation3], 1
    %63 = vsyncpa [#allocation4], 1

</llo_original>
